<compile_context>
chip_gen: v5e
topology: v5e:2x2
jax: 0.10.0
libtpu: 0.0.40
codegen_flags: <defaults>
</compile_context>

<pallas_src>
import numpy as np
import jax
import jax.numpy as jnp
from jax.experimental import pallas as pl
from jax.experimental.pallas import tpu as pltpu

WALL_COT = 1.0   # config['cot']['wall_cot']  (deterministic synthetic config)
TUNING = 1.0     # self.tuning_parameter

_LANES = 128
_VMEM_BUDGET = 8 * 1024 * 1024   # target for the double-buffered per-step working set


def _pick_tile(S, C, itemsize):
    """Largest spatial tile (in sublane rows of 128 lanes) that is either the
    full S or a multiple of 8 dividing S, and keeps the double-buffered
    per-step working set (4 channel inputs + mask + eloss) under budget."""
    bytes_per_row = (4 * C + 2) * _LANES * itemsize * 2   # x2: double buffering
    t_max = max(8, _VMEM_BUDGET // bytes_per_row)
    if S <= t_max:
        return S
    t = (t_max // 8) * 8
    while t >= 8:
        if S % t == 0:
            return t
        t -= 8
    return S   # no suitable divisor: fall back to one full-S block per batch element


def _stats_kernel(enc1_ref, dec1_ref, out_ref, init_ref, mask_ref,
                  eloss_ref, part_ref):
    """Per (batch, spatial-tile) step: channel-summed MSE maps + masked partial
    statistics.  part_ref block (1, 1, 8, 128): lanes 0..4 of every sublane hold
      [0] sum eloss over labeled pixels (0 < mask < wall_cot)
      [1] sum eloss^2 over labeled pixels
      [2] count of labeled pixels
      [3] sum recovery MSE over pixels with mask > 0
      [4] count of pixels with mask > 0
    """
    e1 = enc1_ref[...].astype(jnp.float32)                    # (1, C, T, 128)
    d1 = dec1_ref[...].astype(jnp.float32)
    diff = e1 - d1
    eloss = jnp.sum(diff * diff, axis=1, keepdims=True)       # (1, 1, T, 128)
    eloss_ref[...] = eloss.astype(eloss_ref.dtype)

    m = mask_ref[...].astype(jnp.float32)                     # (1, 1, T, 128)
    pos = jnp.logical_and(m > 0.0, m < WALL_COT).astype(jnp.float32)
    anypos = (m > 0.0).astype(jnp.float32)

    o = out_ref[...].astype(jnp.float32)
    ini = init_ref[...].astype(jnp.float32)
    tgt = jnp.where(m >= WALL_COT, 0.0, ini)                  # mask broadcast over C
    rd = o - tgt
    recov = jnp.sum(rd * rd, axis=1, keepdims=True)           # (1, 1, T, 128)

    s_pos = jnp.sum(eloss * pos)
    s_pos2 = jnp.sum(eloss * eloss * pos)
    n_pos = jnp.sum(pos)
    s_rec = jnp.sum(recov * anypos)
    n_rec = jnp.sum(anypos)

    lane = jax.lax.broadcasted_iota(jnp.int32, (8, _LANES), 1)
    z = jnp.zeros((8, _LANES), jnp.float32)
    pvec = (jnp.where(lane == 0, s_pos, z)
            + jnp.where(lane == 1, s_pos2, z)
            + jnp.where(lane == 2, n_pos, z)
            + jnp.where(lane == 3, s_rec, z)
            + jnp.where(lane == 4, n_rec, z))
    part_ref[...] = pvec.reshape(1, 1, 8, _LANES)


def _confidence_kernel(stats_ref, eloss_ref, conf_ref):
    """confidence = exp(-(e - mean)^2 * inv_denom); 1 where e < mean."""
    mean = stats_ref[0]
    inv_denom = stats_ref[1]          # 1 / (2 * (std * tuning)^2), hoisted
    e = eloss_ref[...].astype(jnp.float32)
    c = jnp.exp(-((e - mean) ** 2) * inv_denom)
    conf_ref[...] = jnp.where(e < mean, jnp.ones_like(c), c).astype(conf_ref.dtype)


@jax.jit
def confidence_loss_forward(outputs, initial, enc1, dec1, masks):
    N, C, H, W = outputs.shape
    HW = H * W
    pad = (-HW) % _LANES
    S = (HW + pad) // _LANES

    def prep(x, c, pad_value=0.0):
        x = x.reshape(N, c, HW)
        if pad:
            x = jnp.pad(x, ((0, 0), (0, 0), (0, pad)), constant_values=pad_value)
        return x.reshape(N, c, S, _LANES)

    o = prep(outputs, C)
    ini = prep(initial, C)
    e1 = prep(enc1, C)
    d1 = prep(dec1, C)
    m = prep(masks, 1, pad_value=-1.0)   # padded pixels: mask <= 0 -> excluded everywhere

    eloss_dtype = e1.dtype
    itemsize = max(jnp.dtype(e1.dtype).itemsize, jnp.dtype(m.dtype).itemsize)
    T = _pick_tile(S, C, itemsize)
    GS = S // T

    chan_spec = pl.BlockSpec((1, C, T, _LANES), lambda b, s: (b, 0, s, 0))
    pix_spec = pl.BlockSpec((1, 1, T, _LANES), lambda b, s: (b, 0, s, 0))
    part_spec = pl.BlockSpec((1, 1, 8, _LANES), lambda b, s: (b, s, 0, 0))
    smem_spec = pl.BlockSpec(memory_space=pltpu.MemorySpace.SMEM)

    eloss, partials = pl.pallas_call(
        _stats_kernel,
        out_shape=(jax.ShapeDtypeStruct((N, 1, S, _LANES), eloss_dtype),
                   jax.ShapeDtypeStruct((N, GS, 8, _LANES), jnp.float32)),
        grid_spec=pltpu.PrefetchScalarGridSpec(
            num_scalar_prefetch=0,
            grid=(N, GS),
            in_specs=[chan_spec, chan_spec, chan_spec, chan_spec, pix_spec],
            out_specs=(pix_spec, part_spec),
        ),
        compiler_params=pltpu.CompilerParams(
            dimension_semantics=("parallel", "parallel")),
    )(e1, d1, o, ini, m)

    # Finalize the global statistics from the per-step partials in plain jnp.
    sums = jnp.sum(partials[:, :, 0, :], axis=(0, 1))          # (128,), f32
    sum_pos, sumsq_pos, n_pos = sums[0], sums[1], sums[2]
    sum_rec, n_rec = sums[3], sums[4]

    # NOTE: n_pos <= 1 or empty positive mask yields inf/NaN, matching torch.
    mse_reco_pos_mean = sum_pos / n_pos
    # Unbiased variance (torch .std() default, ddof=1).
    # TODO(synk): one-pass variance can cancel in f32 when std << mean; switch to
    # shifted / Welford accumulation if that regime occurs in production.
    var_pos = (sumsq_pos - sum_pos * sum_pos / n_pos) / (n_pos - 1.0)
    mse_reco_pos_std = jnp.sqrt(var_pos)

    loss_recov = sum_rec / n_rec
    loss_total = 10.0 * loss_recov + mse_reco_pos_mean

    inv_denom = 1.0 / (2.0 * (mse_reco_pos_std * TUNING) ** 2)
    stats = jnp.stack([mse_reco_pos_mean, inv_denom]).astype(jnp.float32)

    conf = pl.pallas_call(
        _confidence_kernel,
        out_shape=jax.ShapeDtypeStruct((N, 1, S, _LANES), eloss_dtype),
        grid_spec=pltpu.PrefetchScalarGridSpec(
            num_scalar_prefetch=0,
            grid=(N, GS),
            in_specs=[smem_spec, pix_spec],
            out_specs=pix_spec,
        ),
        compiler_params=pltpu.CompilerParams(
            dimension_semantics=("parallel", "parallel")),
    )(stats, eloss)

    conf = conf.reshape(N, 1, S * _LANES)[:, :, :HW].reshape(N, 1, H, W)
    return loss_total, conf


if __name__ == "__main__":
    key = jax.random.PRNGKey(0)
    N, C, H, W = 2, 4, 16, 16
    k1, k2, k3, k4, k5 = jax.random.split(key, 5)
    outputs = jax.random.normal(k1, (N, C, H, W), dtype=jnp.float32)
    initial = jax.random.normal(k2, (N, C, H, W), dtype=jnp.float32)
    enc1 = jax.random.normal(k3, (N, C, H, W), dtype=jnp.float32)
    dec1 = jax.random.normal(k4, (N, C, H, W), dtype=jnp.float32)
    # masks span negative/zero values, "labeled" region (0, wall_cot) and wall
    # region (>= wall_cot) so every branch of the loss is exercised.
    masks = jax.random.uniform(k5, (N, 1, H, W), dtype=jnp.float32,
                               minval=-0.5, maxval=2.0)

    loss_total, confidence = confidence_loss_forward(
        outputs, initial, enc1, dec1, masks)
    jax.block_until_ready((loss_total, confidence))

    # Pure-numpy reference mirroring the PyTorch forward (minus plotting/wandb).
    o_np, i_np, e_np, d_np, m_np = (np.asarray(x, dtype=np.float64) for x in
                                    (outputs, initial, enc1, dec1, masks))
    eloss_ref = ((e_np - d_np) ** 2).sum(axis=1, keepdims=True)
    pos = (m_np > 0) & (m_np < WALL_COT)
    vals = eloss_ref[pos]
    mean = vals.mean()
    std = vals.std(ddof=1)
    conf_ref = np.exp(-((eloss_ref - mean) ** 2) / (2.0 * (std * TUNING) ** 2))
    conf_ref = np.where(eloss_ref < mean, 1.0, conf_ref)
    tgt = np.where(m_np >= WALL_COT, 0.0, i_np)
    recov = ((o_np - tgt) ** 2).sum(axis=1, keepdims=True)
    loss_recov_ref = recov[m_np > 0].mean()
    loss_ref = 10.0 * loss_recov_ref + mean

    np.testing.assert_allclose(float(loss_total), loss_ref, rtol=5e-3, atol=1e-5)
    np.testing.assert_allclose(np.asarray(confidence), conf_ref,
                               rtol=5e-3, atol=1e-4)
    print("KERNEL_OK")
</pallas_src>

<mosaic_0001>
module attributes {stable_mosaic.version = 11 : i64} {
  func.func @_stats_kernel(%arg0: i32, %arg1: i32, %arg2: memref<1x4x2x128xf32, #tpu.memory_space<vmem>>, %arg3: memref<1x4x2x128xf32, #tpu.memory_space<vmem>>, %arg4: memref<1x4x2x128xf32, #tpu.memory_space<vmem>>, %arg5: memref<1x4x2x128xf32, #tpu.memory_space<vmem>>, %arg6: memref<1x1x2x128xf32, #tpu.memory_space<vmem>>, %arg7: memref<1x1x2x128xf32, #tpu.memory_space<vmem>>, %arg8: memref<1x1x8x128xf32, #tpu.memory_space<vmem>>) attributes {dimension_semantics = [#tpu.dimension_semantics<parallel>, #tpu.dimension_semantics<parallel>], iteration_bounds = array<i64: 2, 1>, scalar_prefetch = 0 : i64, scratch_operands = 0 : i64, tpu.core_type = #tpu.core_type<tc>, window_params = [{transform_indices = @transform_0, window_bounds = array<i64: 1, 4, 2, 128>}, {transform_indices = @transform_1, window_bounds = array<i64: 1, 4, 2, 128>}, {transform_indices = @transform_2, window_bounds = array<i64: 1, 4, 2, 128>}, {transform_indices = @transform_3, window_bounds = array<i64: 1, 4, 2, 128>}, {transform_indices = @transform_4, window_bounds = array<i64: 1, 1, 2, 128>}, {transform_indices = @transform_5, window_bounds = array<i64: 1, 1, 2, 128>}, {transform_indices = @transform_6, window_bounds = array<i64: 1, 1, 8, 128>}]} {
    %c0 = arith.constant 0 : index
    %c0_0 = arith.constant 0 : index
    %c0_1 = arith.constant 0 : index
    %c0_2 = arith.constant 0 : index
    %0 = vector.load %arg2[%c0, %c0_0, %c0_1, %c0_2] : memref<1x4x2x128xf32, #tpu.memory_space<vmem>>, vector<1x4x2x128xf32>
    %c0_3 = arith.constant 0 : index
    %c0_4 = arith.constant 0 : index
    %c0_5 = arith.constant 0 : index
    %c0_6 = arith.constant 0 : index
    %1 = vector.load %arg3[%c0_3, %c0_4, %c0_5, %c0_6] : memref<1x4x2x128xf32, #tpu.memory_space<vmem>>, vector<1x4x2x128xf32>
    %2 = arith.subf %0, %1 : vector<1x4x2x128xf32>
    %3 = arith.mulf %2, %2 : vector<1x4x2x128xf32>
    %cst = arith.constant dense<0.000000e+00> : vector<1x2x128xf32>
    %4 = vector.multi_reduction <add>, %3, %cst [1] : vector<1x4x2x128xf32> to vector<1x2x128xf32>
    %5 = vector.shape_cast %4 : vector<1x2x128xf32> to vector<1x1x2x128xf32>
    %c0_7 = arith.constant 0 : index
    %c0_8 = arith.constant 0 : index
    %c0_9 = arith.constant 0 : index
    %c0_10 = arith.constant 0 : index
    %6 = vector.load %arg7[%c0_7, %c0_8, %c0_9, %c0_10] : memref<1x1x2x128xf32, #tpu.memory_space<vmem>>, vector<1x1x2x128xf32>
    tpu.vector_store %arg7[%c0_7, %c0_8, %c0_9, %c0_10], %5 {strides = array<i32>} : memref<1x1x2x128xf32, #tpu.memory_space<vmem>>, vector<1x1x2x128xf32>,
    %c0_11 = arith.constant 0 : index
    %c0_12 = arith.constant 0 : index
    %c0_13 = arith.constant 0 : index
    %c0_14 = arith.constant 0 : index
    %7 = vector.load %arg6[%c0_11, %c0_12, %c0_13, %c0_14] : memref<1x1x2x128xf32, #tpu.memory_space<vmem>>, vector<1x1x2x128xf32>
    %cst_15 = arith.constant 0.000000e+00 : f32
    %8 = vector.broadcast %cst_15 : f32 to vector<1x1x2x128xf32>
    %9 = arith.cmpf ogt, %7, %8 : vector<1x1x2x128xf32>
    %cst_16 = arith.constant 1.000000e+00 : f32
    %10 = vector.broadcast %cst_16 : f32 to vector<1x1x2x128xf32>
    %11 = arith.cmpf olt, %7, %10 : vector<1x1x2x128xf32>
    %12 = arith.andi %9, %11 : vector<1x1x2x128xi1>
    %13 = arith.extui %12 : vector<1x1x2x128xi1> to vector<1x1x2x128xi32>
    %14 = arith.sitofp %13 : vector<1x1x2x128xi32> to vector<1x1x2x128xf32>
    %cst_17 = arith.constant 0.000000e+00 : f32
    %15 = vector.broadcast %cst_17 : f32 to vector<1x1x2x128xf32>
    %16 = arith.cmpf ogt, %7, %15 : vector<1x1x2x128xf32>
    %17 = arith.extui %16 : vector<1x1x2x128xi1> to vector<1x1x2x128xi32>
    %18 = arith.sitofp %17 : vector<1x1x2x128xi32> to vector<1x1x2x128xf32>
    %c0_18 = arith.constant 0 : index
    %c0_19 = arith.constant 0 : index
    %c0_20 = arith.constant 0 : index
    %c0_21 = arith.constant 0 : index
    %19 = vector.load %arg4[%c0_18, %c0_19, %c0_20, %c0_21] : memref<1x4x2x128xf32, #tpu.memory_space<vmem>>, vector<1x4x2x128xf32>
    %c0_22 = arith.constant 0 : index
    %c0_23 = arith.constant 0 : index
    %c0_24 = arith.constant 0 : index
    %c0_25 = arith.constant 0 : index
    %20 = vector.load %arg5[%c0_22, %c0_23, %c0_24, %c0_25] : memref<1x4x2x128xf32, #tpu.memory_space<vmem>>, vector<1x4x2x128xf32>
    %cst_26 = arith.constant 1.000000e+00 : f32
    %21 = vector.broadcast %cst_26 : f32 to vector<1x1x2x128xf32>
    %22 = arith.cmpf oge, %7, %21 : vector<1x1x2x128xf32>
    %cst_27 = arith.constant 0.000000e+00 : f32
    %23 = vector.shape_cast %22 : vector<1x1x2x128xi1> to vector<1x1x2x128xi1>
    %24 = vector.broadcast %23 : vector<1x1x2x128xi1> to vector<1x4x2x128xi1>
    %25 = vector.broadcast %cst_27 : f32 to vector<1x4x2x128xf32>
    %26 = arith.select %24, %25, %20 : vector<1x4x2x128xi1>, vector<1x4x2x128xf32>
    %27 = arith.subf %19, %26 : vector<1x4x2x128xf32>
    %28 = arith.mulf %27, %27 : vector<1x4x2x128xf32>
    %cst_28 = arith.constant dense<0.000000e+00> : vector<1x2x128xf32>
    %29 = vector.multi_reduction <add>, %28, %cst_28 [1] : vector<1x4x2x128xf32> to vector<1x2x128xf32>
    %30 = vector.shape_cast %29 : vector<1x2x128xf32> to vector<1x1x2x128xf32>
    %31 = arith.mulf %5, %14 : vector<1x1x2x128xf32>
    %32 = vector.shape_cast %31 : vector<1x1x2x128xf32> to vector<1x1x1x2x128xf32>
    %cst_29 = arith.constant dense<0.000000e+00> : vector<1xf32>
    %33 = vector.multi_reduction <add>, %32, %cst_29 [1, 2, 3, 4] : vector<1x1x1x2x128xf32> to vector<1xf32>
    %34 = vector.shape_cast %33 : vector<1xf32> to vector<1x1x1x1x1xf32>
    %35 = vector.extract %34[0, 0, 0, 0, 0] : f32 from vector<1x1x1x1x1xf32>
    %36 = arith.mulf %5, %5 : vector<1x1x2x128xf32>
    %37 = arith.mulf %36, %14 : vector<1x1x2x128xf32>
    %38 = vector.shape_cast %37 : vector<1x1x2x128xf32> to vector<1x1x1x2x128xf32>
    %cst_30 = arith.constant dense<0.000000e+00> : vector<1xf32>
    %39 = vector.multi_reduction <add>, %38, %cst_30 [1, 2, 3, 4] : vector<1x1x1x2x128xf32> to vector<1xf32>
    %40 = vector.shape_cast %39 : vector<1xf32> to vector<1x1x1x1x1xf32>
    %41 = vector.extract %40[0, 0, 0, 0, 0] : f32 from vector<1x1x1x1x1xf32>
    %42 = vector.shape_cast %14 : vector<1x1x2x128xf32> to vector<1x1x1x2x128xf32>
    %cst_31 = arith.constant dense<0.000000e+00> : vector<1xf32>
    %43 = vector.multi_reduction <add>, %42, %cst_31 [1, 2, 3, 4] : vector<1x1x1x2x128xf32> to vector<1xf32>
    %44 = vector.shape_cast %43 : vector<1xf32> to vector<1x1x1x1x1xf32>
    %45 = vector.extract %44[0, 0, 0, 0, 0] : f32 from vector<1x1x1x1x1xf32>
    %46 = arith.mulf %30, %18 : vector<1x1x2x128xf32>
    %47 = vector.shape_cast %46 : vector<1x1x2x128xf32> to vector<1x1x1x2x128xf32>
    %cst_32 = arith.constant dense<0.000000e+00> : vector<1xf32>
    %48 = vector.multi_reduction <add>, %47, %cst_32 [1, 2, 3, 4] : vector<1x1x1x2x128xf32> to vector<1xf32>
    %49 = vector.shape_cast %48 : vector<1xf32> to vector<1x1x1x1x1xf32>
    %50 = vector.extract %49[0, 0, 0, 0, 0] : f32 from vector<1x1x1x1x1xf32>
    %51 = vector.shape_cast %18 : vector<1x1x2x128xf32> to vector<1x1x1x2x128xf32>
    %cst_33 = arith.constant dense<0.000000e+00> : vector<1xf32>
    %52 = vector.multi_reduction <add>, %51, %cst_33 [1, 2, 3, 4] : vector<1x1x1x2x128xf32> to vector<1xf32>
    %53 = vector.shape_cast %52 : vector<1xf32> to vector<1x1x1x1x1xf32>
    %54 = vector.extract %53[0, 0, 0, 0, 0] : f32 from vector<1x1x1x1x1xf32>
    %55 = tpu.iota {dimensions = array<i32: 1>} : vector<8x128xi32>
    %cst_34 = arith.constant 0.000000e+00 : f32
    %56 = vector.broadcast %cst_34 : f32 to vector<8x128xf32>
    %c0_i32 = arith.constant 0 : i32
    %57 = vector.broadcast %c0_i32 : i32 to vector<8x128xi32>
    %58 = arith.cmpi eq, %55, %57 : vector<8x128xi32>
    %59 = vector.broadcast %35 : f32 to vector<8x128xf32>
    %60 = arith.select %58, %59, %56 : vector<8x128xi1>, vector<8x128xf32>
    %c1_i32 = arith.constant 1 : i32
    %61 = vector.broadcast %c1_i32 : i32 to vector<8x128xi32>
    %62 = arith.cmpi eq, %55, %61 : vector<8x128xi32>
    %63 = vector.broadcast %41 : f32 to vector<8x128xf32>
    %64 = arith.select %62, %63, %56 : vector<8x128xi1>, vector<8x128xf32>
    %65 = arith.addf %60, %64 : vector<8x128xf32>
    %c2_i32 = arith.constant 2 : i32
    %66 = vector.broadcast %c2_i32 : i32 to vector<8x128xi32>
    %67 = arith.cmpi eq, %55, %66 : vector<8x128xi32>
    %68 = vector.broadcast %45 : f32 to vector<8x128xf32>
    %69 = arith.select %67, %68, %56 : vector<8x128xi1>, vector<8x128xf32>
    %70 = arith.addf %65, %69 : vector<8x128xf32>
    %c3_i32 = arith.constant 3 : i32
    %71 = vector.broadcast %c3_i32 : i32 to vector<8x128xi32>
    %72 = arith.cmpi eq, %55, %71 : vector<8x128xi32>
    %73 = vector.broadcast %50 : f32 to vector<8x128xf32>
    %74 = arith.select %72, %73, %56 : vector<8x128xi1>, vector<8x128xf32>
    %75 = arith.addf %70, %74 : vector<8x128xf32>
    %c4_i32 = arith.constant 4 : i32
    %76 = vector.broadcast %c4_i32 : i32 to vector<8x128xi32>
    %77 = arith.cmpi eq, %55, %76 : vector<8x128xi32>
    %78 = vector.broadcast %54 : f32 to vector<8x128xf32>
    %79 = arith.select %77, %78, %56 : vector<8x128xi1>, vector<8x128xf32>
    %80 = arith.addf %75, %79 : vector<8x128xf32>
    %81 = vector.shape_cast %80 : vector<8x128xf32> to vector<1x1x8x128xf32>
    %c0_35 = arith.constant 0 : index
    %c0_36 = arith.constant 0 : index
    %c0_37 = arith.constant 0 : index
    %c0_38 = arith.constant 0 : index
    %82 = vector.load %arg8[%c0_35, %c0_36, %c0_37, %c0_38] : memref<1x1x8x128xf32, #tpu.memory_space<vmem>>, vector<1x1x8x128xf32>
    tpu.vector_store %arg8[%c0_35, %c0_36, %c0_37, %c0_38], %81 {strides = array<i32>} : memref<1x1x8x128xf32, #tpu.memory_space<vmem>>, vector<1x1x8x128xf32>,
    return
  }
  func.func @transform_0(%arg0: i32, %arg1: i32) -> (i32, i32, i32, i32) {
    %c0_i32 = arith.constant 0 : i32
    %c0_i32_0 = arith.constant 0 : i32
    %c0_i32_1 = arith.constant 0 : i32
    return %arg0, %c0_i32, %arg1, %c0_i32_0 : i32, i32, i32, i32
  }
  func.func @transform_1(%arg0: i32, %arg1: i32) -> (i32, i32, i32, i32) {
    %c0_i32 = arith.constant 0 : i32
    %c0_i32_0 = arith.constant 0 : i32
    %c0_i32_1 = arith.constant 0 : i32
    return %arg0, %c0_i32, %arg1, %c0_i32_0 : i32, i32, i32, i32
  }
  func.func @transform_2(%arg0: i32, %arg1: i32) -> (i32, i32, i32, i32) {
    %c0_i32 = arith.constant 0 : i32
    %c0_i32_0 = arith.constant 0 : i32
    %c0_i32_1 = arith.constant 0 : i32
    return %arg0, %c0_i32, %arg1, %c0_i32_0 : i32, i32, i32, i32
  }
  func.func @transform_3(%arg0: i32, %arg1: i32) -> (i32, i32, i32, i32) {
    %c0_i32 = arith.constant 0 : i32
    %c0_i32_0 = arith.constant 0 : i32
    %c0_i32_1 = arith.constant 0 : i32
    return %arg0, %c0_i32, %arg1, %c0_i32_0 : i32, i32, i32, i32
  }
  func.func @transform_4(%arg0: i32, %arg1: i32) -> (i32, i32, i32, i32) {
    %c0_i32 = arith.constant 0 : i32
    %c0_i32_0 = arith.constant 0 : i32
    %c0_i32_1 = arith.constant 0 : i32
    return %arg0, %c0_i32, %arg1, %c0_i32_0 : i32, i32, i32, i32
  }
  func.func @transform_5(%arg0: i32, %arg1: i32) -> (i32, i32, i32, i32) {
    %c0_i32 = arith.constant 0 : i32
    %c0_i32_0 = arith.constant 0 : i32
    %c0_i32_1 = arith.constant 0 : i32
    return %arg0, %c0_i32, %arg1, %c0_i32_0 : i32, i32, i32, i32
  }
  func.func @transform_6(%arg0: i32, %arg1: i32) -> (i32, i32, i32, i32) {
    %c0_i32 = arith.constant 0 : i32
    %c0_i32_0 = arith.constant 0 : i32
    %c0_i32_1 = arith.constant 0 : i32
    return %arg0, %arg1, %c0_i32, %c0_i32_0 : i32, i32, i32, i32
  }
}

module attributes {stable_mosaic.version = 11 : i64} {
  func.func @_confidence_kernel(%arg0: i32, %arg1: i32, %arg2: memref<2xf32, #tpu.memory_space<smem>>, %arg3: memref<1x1x2x128xf32, #tpu.memory_space<vmem>>, %arg4: memref<1x1x2x128xf32, #tpu.memory_space<vmem>>) attributes {dimension_semantics = [#tpu.dimension_semantics<parallel>, #tpu.dimension_semantics<parallel>], iteration_bounds = array<i64: 2, 1>, scalar_prefetch = 0 : i64, scratch_operands = 0 : i64, tpu.core_type = #tpu.core_type<tc>, window_params = [{transform_indices = @transform_0, window_bounds = array<i64: 2>}, {transform_indices = @transform_1, window_bounds = array<i64: 1, 1, 2, 128>}, {transform_indices = @transform_2, window_bounds = array<i64: 1, 1, 2, 128>}]} {
    %c0 = arith.constant 0 : index
    %0 = memref.load %arg2[%c0] : memref<2xf32, #tpu.memory_space<smem>>
    %c1 = arith.constant 1 : index
    %1 = memref.load %arg2[%c1] : memref<2xf32, #tpu.memory_space<smem>>
    %c0_0 = arith.constant 0 : index
    %c0_1 = arith.constant 0 : index
    %c0_2 = arith.constant 0 : index
    %c0_3 = arith.constant 0 : index
    %2 = vector.load %arg3[%c0_0, %c0_1, %c0_2, %c0_3] : memref<1x1x2x128xf32, #tpu.memory_space<vmem>>, vector<1x1x2x128xf32>
    %3 = vector.broadcast %0 : f32 to vector<1x1x2x128xf32>
    %4 = arith.subf %2, %3 : vector<1x1x2x128xf32>
    %5 = arith.mulf %4, %4 : vector<1x1x2x128xf32>
    %cst = arith.constant 0.000000e+00 : f32
    %6 = vector.broadcast %cst : f32 to vector<1x1x2x128xf32>
    %7 = arith.subf %6, %5 : vector<1x1x2x128xf32>
    %8 = vector.broadcast %1 : f32 to vector<1x1x2x128xf32>
    %9 = arith.mulf %7, %8 : vector<1x1x2x128xf32>
    %10 = math.exp %9 : vector<1x1x2x128xf32>
    %11 = vector.broadcast %0 : f32 to vector<1x1x2x128xf32>
    %12 = arith.cmpf olt, %2, %11 : vector<1x1x2x128xf32>
    %cst_4 = arith.constant 1.000000e+00 : f32
    %13 = vector.broadcast %cst_4 : f32 to vector<1x1x2x128xf32>
    %14 = arith.select %12, %13, %10 : vector<1x1x2x128xi1>, vector<1x1x2x128xf32>
    %c0_5 = arith.constant 0 : index
    %c0_6 = arith.constant 0 : index
    %c0_7 = arith.constant 0 : index
    %c0_8 = arith.constant 0 : index
    %15 = vector.load %arg4[%c0_5, %c0_6, %c0_7, %c0_8] : memref<1x1x2x128xf32, #tpu.memory_space<vmem>>, vector<1x1x2x128xf32>
    tpu.vector_store %arg4[%c0_5, %c0_6, %c0_7, %c0_8], %14 {strides = array<i32>} : memref<1x1x2x128xf32, #tpu.memory_space<vmem>>, vector<1x1x2x128xf32>,
    return
  }
  func.func @transform_0(%arg0: i32, %arg1: i32) -> i32 {
    %c0_i32 = arith.constant 0 : i32
    %c0_i32_0 = arith.constant 0 : i32
    return %c0_i32 : i32
  }
  func.func @transform_1(%arg0: i32, %arg1: i32) -> (i32, i32, i32, i32) {
    %c0_i32 = arith.constant 0 : i32
    %c0_i32_0 = arith.constant 0 : i32
    %c0_i32_1 = arith.constant 0 : i32
    return %arg0, %c0_i32, %arg1, %c0_i32_0 : i32, i32, i32, i32
  }
  func.func @transform_2(%arg0: i32, %arg1: i32) -> (i32, i32, i32, i32) {
    %c0_i32 = arith.constant 0 : i32
    %c0_i32_0 = arith.constant 0 : i32
    %c0_i32_1 = arith.constant 0 : i32
    return %arg0, %c0_i32, %arg1, %c0_i32_0 : i32, i32, i32, i32
  }
}

</mosaic_0001>

<llo_original>
// kernel: confidence_loss_forward.3
$region0: #{confidence_loss_forward.3}
  #allocation0 [shape = 'u32[]', space=smem, size = 0x4, offset = 0x4, fixed_abs, tag = 'smem constant byte address 0x4 - core index']
  #allocation1 [shape = 'u32[72,128]{1,0:T(1,128)}', space=vmem, size = 0x9000, scoped, tag = 'internal scratch']
  %s0 = inlined_call_operand.vmem [shape: f32[2], index: 0, kind: input, shape index: {}]
  %s1 = inlined_call_operand.vmem [shape: f32[2,1,2,128], index: 1, kind: input, shape index: {}]
  %s2 = inlined_call_operand.vmem [shape: f32[2,1,2,128], index: 2, kind: output, shape index: {}]
  %s3 = sld [smem:[#allocation0]]
  $region45: #{confidence_loss_forward.3} parent=0
    _
  %s5 = ssub.s32 1, %s3
  %s6 = scalar_select 0, %s5, %s3
  $region1: #{confidence_loss_forward.3} parent=0
    #allocation2 [shape = 'u8[512]{0}', space=smem, size = 0x200, scoped, tag = 'input window, operand 0, single buffered']
    #allocation3 [shape = 's32[2]{0}', space=sflag, size = 0x8, scoped, tag = 'scoped memory for confidence_loss_forward.3']
    %7 = vsyncpa [#allocation3], 0
    loop: start=0, step=1, limit=4
    $region2: #{confidence_loss_forward.3} parent=1 // loop_pre_header
      _
    $region3: #{confidence_loss_forward.3} parent=1 // loop_header
      %s9 = sphi 0, %s13
      %p10 = scmp.ge.s32.totalorder %s9, 4
      %s16 = sphi 0, %s28
      %s17 = sphi 0, %s24
      %s18 = sphi 0, %s16
      %s19 = sphi 0, %s17
      %s20 = sphi 0, %s18
      %s21 = sphi 0, %s19
      %s29 = sphi 0, %s29
      %s31 = sphi 0, %s29
      %s32 = sphi 0, %s31
      %s46 = sphi 0, %s32
      %s54 = sphi 0, %s56
      %s57 = sphi 0, %s54
      %s58 = sphi 0, %s57
      %s74 = sphi 0, %s58
      %s82 = sphi 0, %s84
      %s85 = sphi 0, %s82
      %s86 = sphi 0, %s85
      %s102 = sphi 0, %s86
    $region4: #{confidence_loss_forward.3} parent=1 // loop_header_branch
      %12 = sbr.rel (%p10) target = $region8
    $region5: #{confidence_loss_forward.3} parent=1 // loop_body
      %s14 = ssub.s32 %s9, 1
      %s15 = ssub.s32 %s9, 2
      %s22 = sadd.s32 1, %s17
      %p23 = scmp.ge.s32.totalorder %s22, 1
      %s24 = scalar_select %p23, 0, %s22
      %s25 = sadd.s32 1, %s16
      %s26 = scalar_select %p23, %s25, %s16
      %p27 = scmp.ge.s32.totalorder %s26, 2
      %s28 = scalar_select %p27, 0, %s26
      %s30 = sadd.s32 %s29, 1
      %p33 = scmp.eq.s32.totalorder %s9, 1
      %p34 = scmp.ne.s32.totalorder %s29, %s31
      %p35 = scmp.eq.s32.totalorder %s9, 0
      %p36 = por %p34, %p35
      %p37 = scmp.ne.s32.totalorder %s29, %s31
      %p38 = scmp.eq.s32.totalorder %s14, 1
      %p39 = por %p37, %p38
      %p40 = scmp.ne.s32.totalorder %s31, %s32
      %p41 = scmp.eq.s32.totalorder %s14, 0
      %p42 = por %p40, %p41
      %p43 = scmp.ne.s32.totalorder %s31, %s32
      %p44 = scmp.eq.s32.totalorder %s15, 1
      %p45 = por %p43, %p44
      %p47 = scmp.ne.s32.totalorder %s32, %s46
      %p48 = scmp.eq.s32.totalorder %s15, 0
      %p49 = por %p47, %p48
      %s50 = ssub.s32 %s16, %s28
      %s51 = ssub.s32 %s17, %s24
      %s52 = sor.u32 %s50, %s51
      %p53 = scmp.eq.s32.totalorder %s52, 0
      %s55 = sadd.s32 %s54, 1
      %s56 = scalar_select %p53, %s54, %s55
      %p59 = pneg %p53
      %p60 = scmp.eq.s32.totalorder %s9, 1
      %p61 = por %p59, %p60
      %p62 = scmp.ne.s32.totalorder %s54, %s57
      %p63 = scmp.eq.s32.totalorder %s9, 0
      %p64 = por %p62, %p63
      %p65 = scmp.ne.s32.totalorder %s54, %s57
      %p66 = scmp.eq.s32.totalorder %s14, 1
      %p67 = por %p65, %p66
      %p68 = scmp.ne.s32.totalorder %s57, %s58
      %p69 = scmp.eq.s32.totalorder %s14, 0
      %p70 = por %p68, %p69
      %p71 = scmp.ne.s32.totalorder %s57, %s58
      %p72 = scmp.eq.s32.totalorder %s15, 1
      %p73 = por %p71, %p72
      %p75 = scmp.ne.s32.totalorder %s58, %s74
      %p76 = scmp.eq.s32.totalorder %s15, 0
      %p77 = por %p75, %p76
      %s78 = ssub.s32 %s16, %s28
      %s79 = ssub.s32 %s17, %s24
      %s80 = sor.u32 %s78, %s79
      %p81 = scmp.eq.s32.totalorder %s80, 0
      %s83 = sadd.s32 %s82, 1
      %s84 = scalar_select %p81, %s82, %s83
      %p87 = pneg %p81
      %p88 = scmp.eq.s32.totalorder %s9, 1
      %p89 = por %p87, %p88
      %p90 = scmp.ne.s32.totalorder %s82, %s85
      %p91 = scmp.eq.s32.totalorder %s9, 0
      %p92 = por %p90, %p91
      %p93 = scmp.ne.s32.totalorder %s82, %s85
      %p94 = scmp.eq.s32.totalorder %s14, 1
      %p95 = por %p93, %p94
      %p96 = scmp.ne.s32.totalorder %s85, %s86
      %p97 = scmp.eq.s32.totalorder %s14, 0
      %p98 = por %p96, %p97
      %p99 = scmp.ne.s32.totalorder %s85, %s86
      %p100 = scmp.eq.s32.totalorder %s15, 1
      %p101 = por %p99, %p100
      %p103 = scmp.ne.s32.totalorder %s86, %s102
      %p104 = scmp.eq.s32.totalorder %s15, 0
      %p105 = por %p103, %p104
      %p106 = scmp.le.s32.totalorder 1, %s9
      %p107 = scmp.lt.s32.totalorder %s9, 3
      %p108 = pnand %p106, %p107
      %p109 = pneg %p108
      // Predicated region
      $region9: #{confidence_loss_forward.3} parent=5 // pred_check
        _
      $region10: #{confidence_loss_forward.3} parent=5 // pred_check_branch
        %111 = sbr.rel (%p108) target = $region12
      $region11: #{confidence_loss_forward.3} parent=5 // pred_region
        %s112 = ssub.s32 %s9, 1
        // Predicated region
        $region13: #{confidence_loss_forward.3} parent=11 // pred_check
          %p113 = pneg %p42
        $region14: #{confidence_loss_forward.3} parent=11 // pred_check_branch
          %115 = sbr.rel (%p113) target = $region16
        $region15: #{confidence_loss_forward.3} parent=11 // pred_region
          %117 = vsyncadd [#allocation3], 0
          %s119 = sshll.u32 %s0, 4
          %s120 = int_to_ptr.vmem [resolvable:$true] %s119
          %122 = dma.vmem_to_smem %s120, 16, [#allocation2], [#allocation3]
        $region16: #{confidence_loss_forward.3} parent=11 // pred_fallthru
          _
      $region12: #{confidence_loss_forward.3} parent=5 // pred_fallthru
        _
      %p123 = scmp.lt.s32.totalorder %s9, 2
      // Predicated region
      $region17: #{confidence_loss_forward.3} parent=5 // pred_check
        %p124 = pneg %p123
      $region18: #{confidence_loss_forward.3} parent=5 // pred_check_branch
        %126 = sbr.rel (%p124) target = $region20
      $region19: #{confidence_loss_forward.3} parent=5 // pred_region
        // Predicated region
        $region21: #{confidence_loss_forward.3} parent=19 // pred_check
          %p127 = pneg %p64
        $region22: #{confidence_loss_forward.3} parent=19 // pred_check_branch
          %129 = sbr.rel (%p127) target = $region24
        $region23: #{confidence_loss_forward.3} parent=19 // pred_region
          %p130 = scmp.lt.s32.totalorder %s16, 1
          %s131 = scalar_select %p130, %s16, 1
          %p132 = scmp.lt.s32.totalorder %s17, 0
          %s133 = scalar_select %p132, %s17, 0
          %s134 = sadd.s32 %s133, %s131
          %s135 = smul.addr %s134, 2
          %s136 = scalar_lea.vmem %s1, %s135
        $region24: #{confidence_loss_forward.3} parent=19 // pred_fallthru
          _
      $region20: #{confidence_loss_forward.3} parent=5 // pred_fallthru
        _
      %p137 = scmp.le.s32.totalorder 1, %s9
      %p138 = scmp.lt.s32.totalorder %s9, 3
      %p139 = pnand %p137, %p138
      %p140 = pneg %p139
      // Predicated region
      $region25: #{confidence_loss_forward.3} parent=5 // pred_check
        _
      $region26: #{confidence_loss_forward.3} parent=5 // pred_check_branch
        %142 = sbr.rel (%p139) target = $region28
      $region27: #{confidence_loss_forward.3} parent=5 // pred_region
        %s143 = ssub.s32 %s9, 1
        // Predicated region
        $region29: #{confidence_loss_forward.3} parent=27 // pred_check
          %p144 = pneg %p42
        $region30: #{confidence_loss_forward.3} parent=27 // pred_check_branch
          %146 = sbr.rel (%p144) target = $region32
        $region31: #{confidence_loss_forward.3} parent=27 // pred_region
          %148 = dma.done [#allocation3], 16
        $region32: #{confidence_loss_forward.3} parent=27 // pred_fallthru
          _
        %149 = sfence
        %p150 = pneg %p42
        %p151 = pneg %p39
        %p152 = scmp.lt.s32.totalorder %s18, 1
        %s153 = scalar_select %p152, %s18, 1
        %p154 = scmp.lt.s32.totalorder %s19, 0
        %s155 = scalar_select %p154, %s19, 0
        %s156 = sadd.s32 %s155, %s153
        %s157 = smul.addr %s156, 2
        %s158 = scalar_lea.vmem %s1, %s157
        %p159 = pneg %p70
        %p160 = pneg %p67
        %p161 = pneg %p98
        %p162 = pneg %p95
        %p163 = scmp.lt.s32.totalorder %s18, 1
        %s164 = scalar_select %p163, %s18, 1
        %p165 = scmp.lt.s32.totalorder %s19, 0
        %s166 = scalar_select %p165, %s19, 0
        %s167 = sadd.s32 %s166, %s164
        %s168 = smul.addr %s167, 2
        %s169 = scalar_lea.vmem %s2, %s168
        %p170 = scmp.lt.s32.totalorder %s18, 1
        %s171 = scalar_select %p170, %s18, 1
        %p172 = scmp.lt.s32.totalorder %s19, 0
        %s173 = scalar_select %p172, %s19, 0
        %s174 = sadd.s32 %s173, %s171
        %s175 = smul.addr %s174, 2
        %s176 = scalar_lea.vmem %s1, %s175
        %p177 = scmp.lt.s32.totalorder %s18, 1
        %s178 = scalar_select %p177, %s18, 1
        %p179 = scmp.lt.s32.totalorder %s19, 0
        %s180 = scalar_select %p179, %s19, 0
        %s181 = sadd.s32 %s180, %s178
        %s182 = smul.addr %s181, 2
        %s183 = scalar_lea.vmem %s2, %s182
        %s184 = sld [smem:[#allocation2]]
        %s185 = sld [smem:[#allocation2 + $0x1]]
        %v186 = vld [vmem:[%s176] sm:$0x3]
        %v187 = vstv %s184
        %v188 = vsub.f32 %v186, %v187
        %v189 = vmul.f32 %v188, %v188
        %v190 = vsub.f32 0.0, %v189
        %v191 = vstv %s185
        %v192 = vmul.f32 %v190, %v191
        %v193 = vmul.f32 %v192, 1.442695
        %v194 = vpow.pop %v193
        %vm195 = vcmp.lt.f32.partialorder %v186, %v187
        %v196 = vsel %vm195, 1.0, %v194
        %197 = vst [vmem:[%s183] sm:$0x3] %v196
        %p198 = scmp.lt.s32.totalorder %s18, 1
        %s199 = scalar_select %p198, %s18, 1
        %p200 = scmp.lt.s32.totalorder %s19, 0
        %s201 = scalar_select %p200, %s19, 0
        %s202 = sadd.s32 %s201, %s199
        %s203 = smul.addr %s202, 2
        %s204 = scalar_lea.vmem %s2, %s203
        // Predicated region
        $region33: #{confidence_loss_forward.3} parent=27 // pred_check
          %p205 = pneg %p95
        $region34: #{confidence_loss_forward.3} parent=27 // pred_check_branch
          %207 = sbr.rel (%p205) target = $region36
        $region35: #{confidence_loss_forward.3} parent=27 // pred_region
          _
        $region36: #{confidence_loss_forward.3} parent=27 // pred_fallthru
          _
      $region28: #{confidence_loss_forward.3} parent=5 // pred_fallthru
        _
      %p208 = scmp.le.s32.totalorder 2, %s9
      // Predicated region
      $region37: #{confidence_loss_forward.3} parent=5 // pred_check
        %p209 = pneg %p208
      $region38: #{confidence_loss_forward.3} parent=5 // pred_check_branch
        %211 = sbr.rel (%p209) target = $region40
      $region39: #{confidence_loss_forward.3} parent=5 // pred_region
        %s212 = ssub.s32 %s9, 2
        // Predicated region
        $region41: #{confidence_loss_forward.3} parent=39 // pred_check
          %p213 = pneg %p101
        $region42: #{confidence_loss_forward.3} parent=39 // pred_check_branch
          %215 = sbr.rel (%p213) target = $region44
        $region43: #{confidence_loss_forward.3} parent=39 // pred_region
          %p216 = scmp.lt.s32.totalorder %s20, 1
          %s217 = scalar_select %p216, %s20, 1
          %p218 = scmp.lt.s32.totalorder %s21, 0
          %s219 = scalar_select %p218, %s21, 0
          %s220 = sadd.s32 %s219, %s217
          %s221 = smul.addr %s220, 2
          %s222 = scalar_lea.vmem %s2, %s221
        $region44: #{confidence_loss_forward.3} parent=39 // pred_fallthru
          _
      $region40: #{confidence_loss_forward.3} parent=5 // pred_fallthru
        _
    $region6: #{confidence_loss_forward.3} parent=1 // loop_footer
      %s13 = sadd.s32 1, %s9
    $region7: #{confidence_loss_forward.3} parent=1 // loop_footer_branch
      %8 = sbr.rel target = $region3
    $region8: #{confidence_loss_forward.3} parent=1 // loop_exit
      _
    %223 = vsyncpa [#allocation3], 1
    %s224 = scalar_lea.sflag [#allocation3], 1
    %225 = vsyncpa %s224, 1

// kernel: confidence_loss_forward.2
$region0: #{confidence_loss_forward.2}
  #allocation0 [shape = 'u32[]', space=smem, size = 0x4, offset = 0x4, fixed_abs, tag = 'smem constant byte address 0x4 - core index']
  #allocation1 [shape = 'u32[72,128]{1,0:T(1,128)}', space=vmem, size = 0x9000, scoped, tag = 'internal scratch']
  %s0 = inlined_call_operand.vmem [shape: f32[2,4,2,128], index: 0, kind: input, shape index: {}]
  %s1 = inlined_call_operand.vmem [shape: f32[2,4,2,128], index: 1, kind: input, shape index: {}]
  %s2 = inlined_call_operand.vmem [shape: f32[2,4,2,128], index: 2, kind: input, shape index: {}]
  %s3 = inlined_call_operand.vmem [shape: f32[2,4,2,128], index: 3, kind: input, shape index: {}]
  %s4 = inlined_call_operand.vmem [shape: f32[2,1,2,128], index: 4, kind: input, shape index: {}]
  %s5 = inlined_call_operand.vmem [shape: f32[2,1,2,128], index: 5, kind: output, shape index: {0}]
  %s6 = inlined_call_operand.vmem [shape: f32[2,1,8,128], index: 6, kind: output, shape index: {1}]
  %7 = xla_tuple %s5, %s6
  %s8 = sld [smem:[#allocation0]]
  $region61: #{confidence_loss_forward.2} parent=0
    _
  %s10 = ssub.s32 1, %s8
  %s11 = scalar_select 0, %s10, %s8
  loop: start=0, step=1, limit=4
  $region2: #{confidence_loss_forward.2} parent=0 // loop_pre_header
    _
  $region3: #{confidence_loss_forward.2} parent=0 // loop_header
    %s13 = sphi 0, %s17
    %p14 = scmp.ge.s32.totalorder %s13, 4
    %s20 = sphi 0, %s32
    %s21 = sphi 0, %s28
    %s22 = sphi 0, %s20
    %s23 = sphi 0, %s21
    %s24 = sphi 0, %s22
    %s25 = sphi 0, %s23
    %s37 = sphi 0, %s39
    %s40 = sphi 0, %s37
    %s41 = sphi 0, %s40
    %s57 = sphi 0, %s41
    %s65 = sphi 0, %s67
    %s68 = sphi 0, %s65
    %s69 = sphi 0, %s68
    %s85 = sphi 0, %s69
    %s93 = sphi 0, %s95
    %s96 = sphi 0, %s93
    %s97 = sphi 0, %s96
    %s113 = sphi 0, %s97
    %s121 = sphi 0, %s123
    %s124 = sphi 0, %s121
    %s125 = sphi 0, %s124
    %s141 = sphi 0, %s125
    %s149 = sphi 0, %s151
    %s152 = sphi 0, %s149
    %s153 = sphi 0, %s152
    %s169 = sphi 0, %s153
    %s177 = sphi 0, %s179
    %s180 = sphi 0, %s177
    %s181 = sphi 0, %s180
    %s197 = sphi 0, %s181
    %s205 = sphi 0, %s207
    %s208 = sphi 0, %s205
    %s209 = sphi 0, %s208
    %s225 = sphi 0, %s209
  $region4: #{confidence_loss_forward.2} parent=0 // loop_header_branch
    %16 = sbr.rel (%p14) target = $region8
  $region5: #{confidence_loss_forward.2} parent=0 // loop_body
    %s18 = ssub.s32 %s13, 1
    %s19 = ssub.s32 %s13, 2
    %s26 = sadd.s32 1, %s21
    %p27 = scmp.ge.s32.totalorder %s26, 1
    %s28 = scalar_select %p27, 0, %s26
    %s29 = sadd.s32 1, %s20
    %s30 = scalar_select %p27, %s29, %s20
    %p31 = scmp.ge.s32.totalorder %s30, 2
    %s32 = scalar_select %p31, 0, %s30
    %s33 = ssub.s32 %s20, %s32
    %s34 = ssub.s32 %s21, %s28
    %s35 = sor.u32 %s33, %s34
    %p36 = scmp.eq.s32.totalorder %s35, 0
    %s38 = sadd.s32 %s37, 1
    %s39 = scalar_select %p36, %s37, %s38
    %p42 = pneg %p36
    %p43 = scmp.eq.s32.totalorder %s13, 1
    %p44 = por %p42, %p43
    %p45 = scmp.ne.s32.totalorder %s37, %s40
    %p46 = scmp.eq.s32.totalorder %s13, 0
    %p47 = por %p45, %p46
    %p48 = scmp.ne.s32.totalorder %s37, %s40
    %p49 = scmp.eq.s32.totalorder %s18, 1
    %p50 = por %p48, %p49
    %p51 = scmp.ne.s32.totalorder %s40, %s41
    %p52 = scmp.eq.s32.totalorder %s18, 0
    %p53 = por %p51, %p52
    %p54 = scmp.ne.s32.totalorder %s40, %s41
    %p55 = scmp.eq.s32.totalorder %s19, 1
    %p56 = por %p54, %p55
    %p58 = scmp.ne.s32.totalorder %s41, %s57
    %p59 = scmp.eq.s32.totalorder %s19, 0
    %p60 = por %p58, %p59
    %s61 = ssub.s32 %s20, %s32
    %s62 = ssub.s32 %s21, %s28
    %s63 = sor.u32 %s61, %s62
    %p64 = scmp.eq.s32.totalorder %s63, 0
    %s66 = sadd.s32 %s65, 1
    %s67 = scalar_select %p64, %s65, %s66
    %p70 = pneg %p64
    %p71 = scmp.eq.s32.totalorder %s13, 1
    %p72 = por %p70, %p71
    %p73 = scmp.ne.s32.totalorder %s65, %s68
    %p74 = scmp.eq.s32.totalorder %s13, 0
    %p75 = por %p73, %p74
    %p76 = scmp.ne.s32.totalorder %s65, %s68
    %p77 = scmp.eq.s32.totalorder %s18, 1
    %p78 = por %p76, %p77
    %p79 = scmp.ne.s32.totalorder %s68, %s69
    %p80 = scmp.eq.s32.totalorder %s18, 0
    %p81 = por %p79, %p80
    %p82 = scmp.ne.s32.totalorder %s68, %s69
    %p83 = scmp.eq.s32.totalorder %s19, 1
    %p84 = por %p82, %p83
    %p86 = scmp.ne.s32.totalorder %s69, %s85
    %p87 = scmp.eq.s32.totalorder %s19, 0
    %p88 = por %p86, %p87
    %s89 = ssub.s32 %s20, %s32
    %s90 = ssub.s32 %s21, %s28
    %s91 = sor.u32 %s89, %s90
    %p92 = scmp.eq.s32.totalorder %s91, 0
    %s94 = sadd.s32 %s93, 1
    %s95 = scalar_select %p92, %s93, %s94
    %p98 = pneg %p92
    %p99 = scmp.eq.s32.totalorder %s13, 1
    %p100 = por %p98, %p99
    %p101 = scmp.ne.s32.totalorder %s93, %s96
    %p102 = scmp.eq.s32.totalorder %s13, 0
    %p103 = por %p101, %p102
    %p104 = scmp.ne.s32.totalorder %s93, %s96
    %p105 = scmp.eq.s32.totalorder %s18, 1
    %p106 = por %p104, %p105
    %p107 = scmp.ne.s32.totalorder %s96, %s97
    %p108 = scmp.eq.s32.totalorder %s18, 0
    %p109 = por %p107, %p108
    %p110 = scmp.ne.s32.totalorder %s96, %s97
    %p111 = scmp.eq.s32.totalorder %s19, 1
    %p112 = por %p110, %p111
    %p114 = scmp.ne.s32.totalorder %s97, %s113
    %p115 = scmp.eq.s32.totalorder %s19, 0
    %p116 = por %p114, %p115
    %s117 = ssub.s32 %s20, %s32
    %s118 = ssub.s32 %s21, %s28
    %s119 = sor.u32 %s117, %s118
    %p120 = scmp.eq.s32.totalorder %s119, 0
    %s122 = sadd.s32 %s121, 1
    %s123 = scalar_select %p120, %s121, %s122
    %p126 = pneg %p120
    %p127 = scmp.eq.s32.totalorder %s13, 1
    %p128 = por %p126, %p127
    %p129 = scmp.ne.s32.totalorder %s121, %s124
    %p130 = scmp.eq.s32.totalorder %s13, 0
    %p131 = por %p129, %p130
    %p132 = scmp.ne.s32.totalorder %s121, %s124
    %p133 = scmp.eq.s32.totalorder %s18, 1
    %p134 = por %p132, %p133
    %p135 = scmp.ne.s32.totalorder %s124, %s125
    %p136 = scmp.eq.s32.totalorder %s18, 0
    %p137 = por %p135, %p136
    %p138 = scmp.ne.s32.totalorder %s124, %s125
    %p139 = scmp.eq.s32.totalorder %s19, 1
    %p140 = por %p138, %p139
    %p142 = scmp.ne.s32.totalorder %s125, %s141
    %p143 = scmp.eq.s32.totalorder %s19, 0
    %p144 = por %p142, %p143
    %s145 = ssub.s32 %s20, %s32
    %s146 = ssub.s32 %s21, %s28
    %s147 = sor.u32 %s145, %s146
    %p148 = scmp.eq.s32.totalorder %s147, 0
    %s150 = sadd.s32 %s149, 1
    %s151 = scalar_select %p148, %s149, %s150
    %p154 = pneg %p148
    %p155 = scmp.eq.s32.totalorder %s13, 1
    %p156 = por %p154, %p155
    %p157 = scmp.ne.s32.totalorder %s149, %s152
    %p158 = scmp.eq.s32.totalorder %s13, 0
    %p159 = por %p157, %p158
    %p160 = scmp.ne.s32.totalorder %s149, %s152
    %p161 = scmp.eq.s32.totalorder %s18, 1
    %p162 = por %p160, %p161
    %p163 = scmp.ne.s32.totalorder %s152, %s153
    %p164 = scmp.eq.s32.totalorder %s18, 0
    %p165 = por %p163, %p164
    %p166 = scmp.ne.s32.totalorder %s152, %s153
    %p167 = scmp.eq.s32.totalorder %s19, 1
    %p168 = por %p166, %p167
    %p170 = scmp.ne.s32.totalorder %s153, %s169
    %p171 = scmp.eq.s32.totalorder %s19, 0
    %p172 = por %p170, %p171
    %s173 = ssub.s32 %s20, %s32
    %s174 = ssub.s32 %s21, %s28
    %s175 = sor.u32 %s173, %s174
    %p176 = scmp.eq.s32.totalorder %s175, 0
    %s178 = sadd.s32 %s177, 1
    %s179 = scalar_select %p176, %s177, %s178
    %p182 = pneg %p176
    %p183 = scmp.eq.s32.totalorder %s13, 1
    %p184 = por %p182, %p183
    %p185 = scmp.ne.s32.totalorder %s177, %s180
    %p186 = scmp.eq.s32.totalorder %s13, 0
    %p187 = por %p185, %p186
    %p188 = scmp.ne.s32.totalorder %s177, %s180
    %p189 = scmp.eq.s32.totalorder %s18, 1
    %p190 = por %p188, %p189
    %p191 = scmp.ne.s32.totalorder %s180, %s181
    %p192 = scmp.eq.s32.totalorder %s18, 0
    %p193 = por %p191, %p192
    %p194 = scmp.ne.s32.totalorder %s180, %s181
    %p195 = scmp.eq.s32.totalorder %s19, 1
    %p196 = por %p194, %p195
    %p198 = scmp.ne.s32.totalorder %s181, %s197
    %p199 = scmp.eq.s32.totalorder %s19, 0
    %p200 = por %p198, %p199
    %s201 = ssub.s32 %s20, %s32
    %s202 = ssub.s32 %s21, %s28
    %s203 = sor.u32 %s201, %s202
    %p204 = scmp.eq.s32.totalorder %s203, 0
    %s206 = sadd.s32 %s205, 1
    %s207 = scalar_select %p204, %s205, %s206
    %p210 = pneg %p204
    %p211 = scmp.eq.s32.totalorder %s13, 1
    %p212 = por %p210, %p211
    %p213 = scmp.ne.s32.totalorder %s205, %s208
    %p214 = scmp.eq.s32.totalorder %s13, 0
    %p215 = por %p213, %p214
    %p216 = scmp.ne.s32.totalorder %s205, %s208
    %p217 = scmp.eq.s32.totalorder %s18, 1
    %p218 = por %p216, %p217
    %p219 = scmp.ne.s32.totalorder %s208, %s209
    %p220 = scmp.eq.s32.totalorder %s18, 0
    %p221 = por %p219, %p220
    %p222 = scmp.ne.s32.totalorder %s208, %s209
    %p223 = scmp.eq.s32.totalorder %s19, 1
    %p224 = por %p222, %p223
    %p226 = scmp.ne.s32.totalorder %s209, %s225
    %p227 = scmp.eq.s32.totalorder %s19, 0
    %p228 = por %p226, %p227
    %p229 = scmp.le.s32.totalorder 1, %s13
    %p230 = scmp.lt.s32.totalorder %s13, 3
    %p231 = pnand %p229, %p230
    %p232 = pneg %p231
    // Predicated region
    $region9: #{confidence_loss_forward.2} parent=5 // pred_check
      _
    $region10: #{confidence_loss_forward.2} parent=5 // pred_check_branch
      %234 = sbr.rel (%p231) target = $region12
    $region11: #{confidence_loss_forward.2} parent=5 // pred_region
      %s235 = ssub.s32 %s13, 1
    $region12: #{confidence_loss_forward.2} parent=5 // pred_fallthru
      _
    %p236 = scmp.lt.s32.totalorder %s13, 2
    // Predicated region
    $region13: #{confidence_loss_forward.2} parent=5 // pred_check
      %p237 = pneg %p236
    $region14: #{confidence_loss_forward.2} parent=5 // pred_check_branch
      %239 = sbr.rel (%p237) target = $region16
    $region15: #{confidence_loss_forward.2} parent=5 // pred_region
      // Predicated region
      $region17: #{confidence_loss_forward.2} parent=15 // pred_check
        %p240 = pneg %p47
      $region18: #{confidence_loss_forward.2} parent=15 // pred_check_branch
        %242 = sbr.rel (%p240) target = $region20
      $region19: #{confidence_loss_forward.2} parent=15 // pred_region
        %p243 = scmp.lt.s32.totalorder %s20, 1
        %s244 = scalar_select %p243, %s20, 1
        %p245 = scmp.lt.s32.totalorder %s21, 0
        %s246 = scalar_select %p245, %s21, 0
        %s247 = smul.addr %s244, 4
        %s248 = sadd.s32 %s246, %s247
        %s249 = smul.addr %s248, 2
        %s250 = scalar_lea.vmem %s0, %s249
      $region20: #{confidence_loss_forward.2} parent=15 // pred_fallthru
        _
      // Predicated region
      $region21: #{confidence_loss_forward.2} parent=15 // pred_check
        %p251 = pneg %p75
      $region22: #{confidence_loss_forward.2} parent=15 // pred_check_branch
        %253 = sbr.rel (%p251) target = $region24
      $region23: #{confidence_loss_forward.2} parent=15 // pred_region
        %p254 = scmp.lt.s32.totalorder %s20, 1
        %s255 = scalar_select %p254, %s20, 1
        %p256 = scmp.lt.s32.totalorder %s21, 0
        %s257 = scalar_select %p256, %s21, 0
        %s258 = smul.addr %s255, 4
        %s259 = sadd.s32 %s257, %s258
        %s260 = smul.addr %s259, 2
        %s261 = scalar_lea.vmem %s1, %s260
      $region24: #{confidence_loss_forward.2} parent=15 // pred_fallthru
        _
      // Predicated region
      $region25: #{confidence_loss_forward.2} parent=15 // pred_check
        %p262 = pneg %p103
      $region26: #{confidence_loss_forward.2} parent=15 // pred_check_branch
        %264 = sbr.rel (%p262) target = $region28
      $region27: #{confidence_loss_forward.2} parent=15 // pred_region
        %p265 = scmp.lt.s32.totalorder %s20, 1
        %s266 = scalar_select %p265, %s20, 1
        %p267 = scmp.lt.s32.totalorder %s21, 0
        %s268 = scalar_select %p267, %s21, 0
        %s269 = smul.addr %s266, 4
        %s270 = sadd.s32 %s268, %s269
        %s271 = smul.addr %s270, 2
        %s272 = scalar_lea.vmem %s2, %s271
      $region28: #{confidence_loss_forward.2} parent=15 // pred_fallthru
        _
      // Predicated region
      $region29: #{confidence_loss_forward.2} parent=15 // pred_check
        %p273 = pneg %p131
      $region30: #{confidence_loss_forward.2} parent=15 // pred_check_branch
        %275 = sbr.rel (%p273) target = $region32
      $region31: #{confidence_loss_forward.2} parent=15 // pred_region
        %p276 = scmp.lt.s32.totalorder %s20, 1
        %s277 = scalar_select %p276, %s20, 1
        %p278 = scmp.lt.s32.totalorder %s21, 0
        %s279 = scalar_select %p278, %s21, 0
        %s280 = smul.addr %s277, 4
        %s281 = sadd.s32 %s279, %s280
        %s282 = smul.addr %s281, 2
        %s283 = scalar_lea.vmem %s3, %s282
      $region32: #{confidence_loss_forward.2} parent=15 // pred_fallthru
        _
      // Predicated region
      $region33: #{confidence_loss_forward.2} parent=15 // pred_check
        %p284 = pneg %p159
      $region34: #{confidence_loss_forward.2} parent=15 // pred_check_branch
        %286 = sbr.rel (%p284) target = $region36
      $region35: #{confidence_loss_forward.2} parent=15 // pred_region
        %p287 = scmp.lt.s32.totalorder %s20, 1
        %s288 = scalar_select %p287, %s20, 1
        %p289 = scmp.lt.s32.totalorder %s21, 0
        %s290 = scalar_select %p289, %s21, 0
        %s291 = sadd.s32 %s290, %s288
        %s292 = smul.addr %s291, 2
        %s293 = scalar_lea.vmem %s4, %s292
      $region36: #{confidence_loss_forward.2} parent=15 // pred_fallthru
        _
    $region16: #{confidence_loss_forward.2} parent=5 // pred_fallthru
      _
    %p294 = scmp.le.s32.totalorder 1, %s13
    %p295 = scmp.lt.s32.totalorder %s13, 3
    %p296 = pnand %p294, %p295
    %p297 = pneg %p296
    // Predicated region
    $region37: #{confidence_loss_forward.2} parent=5 // pred_check
      _
    $region38: #{confidence_loss_forward.2} parent=5 // pred_check_branch
      %299 = sbr.rel (%p296) target = $region40
    $region39: #{confidence_loss_forward.2} parent=5 // pred_region
      %s300 = ssub.s32 %s13, 1
      %p301 = scmp.lt.s32.totalorder %s22, 1
      %s302 = scalar_select %p301, %s22, 1
      %p303 = scmp.lt.s32.totalorder %s23, 0
      %s304 = scalar_select %p303, %s23, 0
      %s305 = smul.addr %s302, 4
      %s306 = sadd.s32 %s304, %s305
      %s307 = smul.addr %s306, 2
      %s308 = scalar_lea.vmem %s0, %s307
      %p309 = pneg %p53
      %p310 = pneg %p50
      %p311 = scmp.lt.s32.totalorder %s22, 1
      %s312 = scalar_select %p311, %s22, 1
      %p313 = scmp.lt.s32.totalorder %s23, 0
      %s314 = scalar_select %p313, %s23, 0
      %s315 = smul.addr %s312, 4
      %s316 = sadd.s32 %s314, %s315
      %s317 = smul.addr %s316, 2
      %s318 = scalar_lea.vmem %s1, %s317
      %p319 = pneg %p81
      %p320 = pneg %p78
      %p321 = scmp.lt.s32.totalorder %s22, 1
      %s322 = scalar_select %p321, %s22, 1
      %p323 = scmp.lt.s32.totalorder %s23, 0
      %s324 = scalar_select %p323, %s23, 0
      %s325 = smul.addr %s322, 4
      %s326 = sadd.s32 %s324, %s325
      %s327 = smul.addr %s326, 2
      %s328 = scalar_lea.vmem %s2, %s327
      %p329 = pneg %p109
      %p330 = pneg %p106
      %p331 = scmp.lt.s32.totalorder %s22, 1
      %s332 = scalar_select %p331, %s22, 1
      %p333 = scmp.lt.s32.totalorder %s23, 0
      %s334 = scalar_select %p333, %s23, 0
      %s335 = smul.addr %s332, 4
      %s336 = sadd.s32 %s334, %s335
      %s337 = smul.addr %s336, 2
      %s338 = scalar_lea.vmem %s3, %s337
      %p339 = pneg %p137
      %p340 = pneg %p134
      %p341 = scmp.lt.s32.totalorder %s22, 1
      %s342 = scalar_select %p341, %s22, 1
      %p343 = scmp.lt.s32.totalorder %s23, 0
      %s344 = scalar_select %p343, %s23, 0
      %s345 = sadd.s32 %s344, %s342
      %s346 = smul.addr %s345, 2
      %s347 = scalar_lea.vmem %s4, %s346
      %p348 = pneg %p165
      %p349 = pneg %p162
      %p350 = pneg %p193
      %p351 = pneg %p190
      %p352 = scmp.lt.s32.totalorder %s22, 1
      %s353 = scalar_select %p352, %s22, 1
      %p354 = scmp.lt.s32.totalorder %s23, 0
      %s355 = scalar_select %p354, %s23, 0
      %s356 = sadd.s32 %s355, %s353
      %s357 = smul.addr %s356, 2
      %s358 = scalar_lea.vmem %s5, %s357
      %p359 = pneg %p221
      %p360 = pneg %p218
      %p361 = scmp.lt.s32.totalorder %s22, 1
      %s362 = scalar_select %p361, %s22, 1
      %p363 = scmp.lt.s32.totalorder %s23, 0
      %s364 = scalar_select %p363, %s23, 0
      %s365 = sadd.s32 %s364, %s362
      %s366 = smul.addr %s365, 8
      %s367 = scalar_lea.vmem %s6, %s366
      %p368 = scmp.lt.s32.totalorder %s22, 1
      %s369 = scalar_select %p368, %s22, 1
      %p370 = scmp.lt.s32.totalorder %s23, 0
      %s371 = scalar_select %p370, %s23, 0
      %s372 = smul.addr %s369, 4
      %s373 = sadd.s32 %s371, %s372
      %s374 = smul.addr %s373, 2
      %s375 = scalar_lea.vmem %s0, %s374
      %p376 = scmp.lt.s32.totalorder %s22, 1
      %s377 = scalar_select %p376, %s22, 1
      %p378 = scmp.lt.s32.totalorder %s23, 0
      %s379 = scalar_select %p378, %s23, 0
      %s380 = smul.addr %s377, 4
      %s381 = sadd.s32 %s379, %s380
      %s382 = smul.addr %s381, 2
      %s383 = scalar_lea.vmem %s1, %s382
      %p384 = scmp.lt.s32.totalorder %s22, 1
      %s385 = scalar_select %p384, %s22, 1
      %p386 = scmp.lt.s32.totalorder %s23, 0
      %s387 = scalar_select %p386, %s23, 0
      %s388 = smul.addr %s385, 4
      %s389 = sadd.s32 %s387, %s388
      %s390 = smul.addr %s389, 2
      %s391 = scalar_lea.vmem %s2, %s390
      %p392 = scmp.lt.s32.totalorder %s22, 1
      %s393 = scalar_select %p392, %s22, 1
      %p394 = scmp.lt.s32.totalorder %s23, 0
      %s395 = scalar_select %p394, %s23, 0
      %s396 = smul.addr %s393, 4
      %s397 = sadd.s32 %s395, %s396
      %s398 = smul.addr %s397, 2
      %s399 = scalar_lea.vmem %s3, %s398
      %p400 = scmp.lt.s32.totalorder %s22, 1
      %s401 = scalar_select %p400, %s22, 1
      %p402 = scmp.lt.s32.totalorder %s23, 0
      %s403 = scalar_select %p402, %s23, 0
      %s404 = sadd.s32 %s403, %s401
      %s405 = smul.addr %s404, 2
      %s406 = scalar_lea.vmem %s4, %s405
      %p407 = scmp.lt.s32.totalorder %s22, 1
      %s408 = scalar_select %p407, %s22, 1
      %p409 = scmp.lt.s32.totalorder %s23, 0
      %s410 = scalar_select %p409, %s23, 0
      %s411 = sadd.s32 %s410, %s408
      %s412 = smul.addr %s411, 2
      %s413 = scalar_lea.vmem %s5, %s412
      %p414 = scmp.lt.s32.totalorder %s22, 1
      %s415 = scalar_select %p414, %s22, 1
      %p416 = scmp.lt.s32.totalorder %s23, 0
      %s417 = scalar_select %p416, %s23, 0
      %s418 = sadd.s32 %s417, %s415
      %s419 = smul.addr %s418, 8
      %s420 = scalar_lea.vmem %s6, %s419
      %v421 = vld [vmem:[%s375] sm:$0x3]
      %v422 = vld [vmem:[%s375 + $0x2] sm:$0x3]
      %v423 = vld [vmem:[%s375 + $0x4] sm:$0x3]
      %v424 = vld [vmem:[%s375 + $0x6] sm:$0x3]
      %v425 = vld [vmem:[%s383] sm:$0x3]
      %v426 = vld [vmem:[%s383 + $0x2] sm:$0x3]
      %v427 = vld [vmem:[%s383 + $0x4] sm:$0x3]
      %v428 = vld [vmem:[%s383 + $0x6] sm:$0x3]
      %v429 = vsub.f32 %v421, %v425
      %v430 = vsub.f32 %v422, %v426
      %v431 = vsub.f32 %v423, %v427
      %v432 = vsub.f32 %v424, %v428
      %v433 = vmul.f32 %v429, %v429
      %v434 = vmul.f32 %v430, %v430
      %v435 = vmul.f32 %v431, %v431
      %v436 = vmul.f32 %v432, %v432
      %vm437 = vcmask 1041408
      %v438 = vsel %vm437, %v433, 0.0
      %v439 = vsel %vm437, %v434, 0.0
      %v440 = vadd.f32 %v438, %v439
      %v441 = vsel %vm437, %v435, 0.0
      %v442 = vadd.f32 %v440, %v441
      %v443 = vsel %vm437, %v436, 0.0
      %v444 = vadd.f32 %v442, %v443
      %445 = vst [vmem:[%s413] sm:$0x3] %v444
      %v446 = vld [vmem:[%s406] sm:$0x3]
      %vm447 = vcmp.gt.f32.partialorder %v446, 0.0
      %vm448 = vcmp.lt.f32.partialorder %v446, 1.0
      %vm449 = vmand %vm447, %vm448
      %v450 = vsel %vm449, 1, 0
      %v451 = vcvt.s32.f32 %v450
      %v452 = vsel %vm447, 1, 0
      %v453 = vcvt.s32.f32 %v452
      %v454 = vld [vmem:[%s391] sm:$0x3]
      %v455 = vld [vmem:[%s391 + $0x2] sm:$0x3]
      %v456 = vld [vmem:[%s391 + $0x4] sm:$0x3]
      %v457 = vld [vmem:[%s391 + $0x6] sm:$0x3]
      %v458 = vld [vmem:[%s399] sm:$0x3]
      %v459 = vld [vmem:[%s399 + $0x2] sm:$0x3]
      %v460 = vld [vmem:[%s399 + $0x4] sm:$0x3]
      %v461 = vld [vmem:[%s399 + $0x6] sm:$0x3]
      %vm462 = vcmp.ge.f32.partialorder %v446, 1.0
      %v463 = vsel %vm462, 1, 0
      %vm464 = vcmp.eq.s32.totalorder %v463, 1
      %v465 = vsel %vm464, 0.0, %v458
      %v466 = vsel %vm464, 0.0, %v459
      %v467 = vsel %vm464, 0.0, %v460
      %v468 = vsel %vm464, 0.0, %v461
      %v469 = vsub.f32 %v454, %v465
      %v470 = vsub.f32 %v455, %v466
      %v471 = vsub.f32 %v456, %v467
      %v472 = vsub.f32 %v457, %v468
      %v473 = vmul.f32 %v469, %v469
      %v474 = vmul.f32 %v470, %v470
      %v475 = vmul.f32 %v471, %v471
      %v476 = vmul.f32 %v472, %v472
      %v477 = vsel %vm437, %v473, 0.0
      %v478 = vsel %vm437, %v474, 0.0
      %v479 = vadd.f32 %v477, %v478
      %v480 = vsel %vm437, %v475, 0.0
      %v481 = vadd.f32 %v479, %v480
      %v482 = vsel %vm437, %v476, 0.0
      %v483 = vadd.f32 %v481, %v482
      %v484 = vmul.f32 %v444, %v451
      %v485 = vsel %vm437, %v484, 0.0
      %486 = vadd.xlane.f32.xlu0 %v485
      %v487 = vpop.xlane.xlu0 %486
      %v488 = vrot.slane %v487, 4
      %v489 = vadd.f32 %v487, %v488
      %v490 = vrot.slane %v489, 2
      %v491 = vadd.f32 %v489, %v490
      %v492 = vrot.slane %v491, 1
      %v493 = vadd.f32 %v491, %v492
      %s494 = vtos %v493
      %v495 = vmul.f32 %v444, %v444
      %v496 = vmul.f32 %v495, %v451
      %v497 = vsel %vm437, %v496, 0.0
      %498 = vadd.xlane.f32.xlu0 %v497
      %v499 = vpop.xlane.xlu0 %498
      %v500 = vrot.slane %v499, 4
      %v501 = vadd.f32 %v499, %v500
      %v502 = vrot.slane %v501, 2
      %v503 = vadd.f32 %v501, %v502
      %v504 = vrot.slane %v503, 1
      %v505 = vadd.f32 %v503, %v504
      %s506 = vtos %v505
      %v507 = vsel %vm437, %v451, 0.0
      %508 = vadd.xlane.f32.xlu0 %v507
      %v509 = vpop.xlane.xlu0 %508
      %v510 = vrot.slane %v509, 4
      %v511 = vadd.f32 %v509, %v510
      %v512 = vrot.slane %v511, 2
      %v513 = vadd.f32 %v511, %v512
      %v514 = vrot.slane %v513, 1
      %v515 = vadd.f32 %v513, %v514
      %s516 = vtos %v515
      %v517 = vmul.f32 %v483, %v453
      %v518 = vsel %vm437, %v517, 0.0
      %519 = vadd.xlane.f32.xlu0 %v518
      %v520 = vpop.xlane.xlu0 %519
      %v521 = vrot.slane %v520, 4
      %v522 = vadd.f32 %v520, %v521
      %v523 = vrot.slane %v522, 2
      %v524 = vadd.f32 %v522, %v523
      %v525 = vrot.slane %v524, 1
      %v526 = vadd.f32 %v524, %v525
      %s527 = vtos %v526
      %v528 = vsel %vm437, %v453, 0.0
      %529 = vadd.xlane.f32.xlu0 %v528
      %v530 = vpop.xlane.xlu0 %529
      %v531 = vrot.slane %v530, 4
      %v532 = vadd.f32 %v530, %v531
      %v533 = vrot.slane %v532, 2
      %v534 = vadd.f32 %v532, %v533
      %v535 = vrot.slane %v534, 1
      %v536 = vadd.f32 %v534, %v535
      %s537 = vtos %v536
      %v538 = vlaneseq
      %v539 = vand.u32 %v538, 127
      %vm540 = vcmp.eq.s32.totalorder %v539, 0
      %v541 = vstv %s494
      %v542 = vsel %vm540, %v541, 0.0
      %vm543 = vcmp.eq.s32.totalorder %v539, 1
      %v544 = vstv %s506
      %v545 = vsel %vm543, %v544, 0.0
      %v546 = vadd.f32 %v542, %v545
      %vm547 = vcmp.eq.s32.totalorder %v539, 2
      %v548 = vstv %s516
      %v549 = vsel %vm547, %v548, 0.0
      %v550 = vadd.f32 %v546, %v549
      %vm551 = vcmp.eq.s32.totalorder %v539, 3
      %v552 = vstv %s527
      %v553 = vsel %vm551, %v552, 0.0
      %v554 = vadd.f32 %v550, %v553
      %vm555 = vcmp.eq.s32.totalorder %v539, 4
      %v556 = vstv %s537
      %v557 = vsel %vm555, %v556, 0.0
      %v558 = vadd.f32 %v554, %v557
      %559 = vst [vmem:[%s420] sm:$0xff] %v558
      %p560 = scmp.lt.s32.totalorder %s22, 1
      %s561 = scalar_select %p560, %s22, 1
      %p562 = scmp.lt.s32.totalorder %s23, 0
      %s563 = scalar_select %p562, %s23, 0
      %s564 = sadd.s32 %s563, %s561
      %s565 = smul.addr %s564, 2
      %s566 = scalar_lea.vmem %s5, %s565
      %p567 = scmp.lt.s32.totalorder %s22, 1
      %s568 = scalar_select %p567, %s22, 1
      %p569 = scmp.lt.s32.totalorder %s23, 0
      %s570 = scalar_select %p569, %s23, 0
      %s571 = sadd.s32 %s570, %s568
      %s572 = smul.addr %s571, 8
      %s573 = scalar_lea.vmem %s6, %s572
      // Predicated region
      $region41: #{confidence_loss_forward.2} parent=39 // pred_check
        %p574 = pneg %p190
      $region42: #{confidence_loss_forward.2} parent=39 // pred_check_branch
        %576 = sbr.rel (%p574) target = $region44
      $region43: #{confidence_loss_forward.2} parent=39 // pred_region
        _
      $region44: #{confidence_loss_forward.2} parent=39 // pred_fallthru
        _
      // Predicated region
      $region45: #{confidence_loss_forward.2} parent=39 // pred_check
        %p577 = pneg %p218
      $region46: #{confidence_loss_forward.2} parent=39 // pred_check_branch
        %579 = sbr.rel (%p577) target = $region48
      $region47: #{confidence_loss_forward.2} parent=39 // pred_region
        _
      $region48: #{confidence_loss_forward.2} parent=39 // pred_fallthru
        _
    $region40: #{confidence_loss_forward.2} parent=5 // pred_fallthru
      _
    %p580 = scmp.le.s32.totalorder 2, %s13
    // Predicated region
    $region49: #{confidence_loss_forward.2} parent=5 // pred_check
      %p581 = pneg %p580
    $region50: #{confidence_loss_forward.2} parent=5 // pred_check_branch
      %583 = sbr.rel (%p581) target = $region52
    $region51: #{confidence_loss_forward.2} parent=5 // pred_region
      %s584 = ssub.s32 %s13, 2
      // Predicated region
      $region53: #{confidence_loss_forward.2} parent=51 // pred_check
        %p585 = pneg %p196
      $region54: #{confidence_loss_forward.2} parent=51 // pred_check_branch
        %587 = sbr.rel (%p585) target = $region56
      $region55: #{confidence_loss_forward.2} parent=51 // pred_region
        %p588 = scmp.lt.s32.totalorder %s24, 1
        %s589 = scalar_select %p588, %s24, 1
        %p590 = scmp.lt.s32.totalorder %s25, 0
        %s591 = scalar_select %p590, %s25, 0
        %s592 = sadd.s32 %s591, %s589
        %s593 = smul.addr %s592, 2
        %s594 = scalar_lea.vmem %s5, %s593
      $region56: #{confidence_loss_forward.2} parent=51 // pred_fallthru
        _
      // Predicated region
      $region57: #{confidence_loss_forward.2} parent=51 // pred_check
        %p595 = pneg %p224
      $region58: #{confidence_loss_forward.2} parent=51 // pred_check_branch
        %597 = sbr.rel (%p595) target = $region60
      $region59: #{confidence_loss_forward.2} parent=51 // pred_region
        %p598 = scmp.lt.s32.totalorder %s24, 1
        %s599 = scalar_select %p598, %s24, 1
        %p600 = scmp.lt.s32.totalorder %s25, 0
        %s601 = scalar_select %p600, %s25, 0
        %s602 = sadd.s32 %s601, %s599
        %s603 = smul.addr %s602, 8
        %s604 = scalar_lea.vmem %s6, %s603
      $region60: #{confidence_loss_forward.2} parent=51 // pred_fallthru
        _
    $region52: #{confidence_loss_forward.2} parent=5 // pred_fallthru
      _
  $region6: #{confidence_loss_forward.2} parent=0 // loop_footer
    %s17 = sadd.s32 1, %s13
  $region7: #{confidence_loss_forward.2} parent=0 // loop_footer_branch
    %12 = sbr.rel target = $region3
  $region8: #{confidence_loss_forward.2} parent=0 // loop_exit
    _

</llo_original>
